<compile_context>
chip_gen: v7x
topology: tpu7x:2x2x1
jax: 0.10.0
libtpu: 0.0.40
codegen_flags: <defaults>
</compile_context>

<pallas_src>
import jax
import jax.numpy as jnp
from jax import lax
from jax.experimental import pallas as pl
from jax.experimental.pallas import tpu as pltpu


LEAKY_SLOPE = 0.01   # torch.nn.LeakyReLU default negative_slope
LN_EPS = 1e-5        # torch.nn.LayerNorm default eps


def _round_up(a, b):
    return (a + b - 1) // b * b


def _mlp_kernel(x_ref, w1t_ref, w2t_ref, gamma_ref, beta_ref, o_ref):
    # x_ref:   (tm, 2H)   tile of flattened hidden_states (input dtype)
    # w1t_ref: (2H, I)    fc1 weight, transposed (input dtype)
    # w2t_ref: (I,  H)    fc2 weight, transposed (input dtype)
    # gamma/beta: (1, H)  LayerNorm affine params (f32)
    x = x_ref[...]

    # fc1 (MXU, native-dtype operands, f32 accumulation) + leaky_relu (VPU, f32)
    h = jnp.dot(x, w1t_ref[...], preferred_element_type=jnp.float32)
    h = jnp.where(h >= 0, h, LEAKY_SLOPE * h)

    # fc2 (MXU) — cast the activation back to the weight dtype so the MXU
    # runs at full (bf16) rate; accumulate in f32.
    y = jnp.dot(h.astype(w2t_ref.dtype), w2t_ref[...],
                preferred_element_type=jnp.float32)

    # LayerNorm over last dim (hidden), f32 math, matching torch semantics.
    mean = jnp.mean(y, axis=-1, keepdims=True)
    centered = y - mean
    var = jnp.mean(centered * centered, axis=-1, keepdims=True)
    y_norm = centered * lax.rsqrt(var + LN_EPS)

    o_ref[...] = (y_norm * gamma_ref[...] + beta_ref[...]).astype(o_ref.dtype)


def efficientloftr_mlp(hidden_states, w1, w2, gamma, beta, *, row_tile=512):
    """hidden_states: (..., 2*hidden).  w1: (I, 2H), w2: (H, I) as in torch Linear.

    Output dtype == hidden_states.dtype (bf16 in, bf16 out).
    """
    orig_shape = hidden_states.shape
    two_h = orig_shape[-1]
    inter = w1.shape[0]
    hidden = w2.shape[0]
    assert w1.shape == (inter, two_h) and w2.shape == (hidden, inter)

    dtype = hidden_states.dtype
    x = hidden_states.reshape(-1, two_h)
    m = x.shape[0]

    # Choose an effective row tile: multiple of 8, no larger than needed.
    tile = max(8, min(int(row_tile), _round_up(m, 8)))
    tile = _round_up(tile, 8)
    m_pad = _round_up(m, tile)
    if m_pad != m:
        # Pad with zeros; padded rows produce finite garbage (var=0 -> rsqrt(eps))
        # and are sliced off below.
        x = jnp.pad(x, ((0, m_pad - m), (0, 0)))

    # Weights pre-transposed so the kernel does plain row-major matmuls.
    w1t = jnp.transpose(w1).astype(dtype)        # (2H, I)
    w2t = jnp.transpose(w2).astype(dtype)        # (I, H)
    gamma2d = gamma.reshape(1, hidden).astype(jnp.float32)
    beta2d = beta.reshape(1, hidden).astype(jnp.float32)

    grid = (m_pad // tile,)
    out = pl.pallas_call(
        _mlp_kernel,
        out_shape=jax.ShapeDtypeStruct((m_pad, hidden), dtype),
        grid_spec=pltpu.PrefetchScalarGridSpec(
            num_scalar_prefetch=0,
            grid=grid,
            in_specs=[
                pl.BlockSpec((tile, two_h), lambda i: (i, 0)),     # x tile
                pl.BlockSpec((two_h, inter), lambda i: (0, 0)),    # W1^T (resident)
                pl.BlockSpec((inter, hidden), lambda i: (0, 0)),   # W2^T (resident)
                pl.BlockSpec((1, hidden), lambda i: (0, 0)),       # gamma
                pl.BlockSpec((1, hidden), lambda i: (0, 0)),       # beta
            ],
            out_specs=pl.BlockSpec((tile, hidden), lambda i: (i, 0)),
        ),
        compiler_params=pltpu.CompilerParams(
            dimension_semantics=("parallel",)
        ),
    )(x, w1t, w2t, gamma2d, beta2d)

    out = out[:m]
    return out.reshape(orig_shape[:-1] + (hidden,))


def _reference(hidden_states, w1, w2, gamma, beta):
    x = hidden_states.astype(jnp.float32)
    w1f = w1.astype(jnp.float32)
    w2f = w2.astype(jnp.float32)
    h = x @ w1f.T
    h = jnp.where(h >= 0, h, LEAKY_SLOPE * h)
    y = h @ w2f.T
    mean = jnp.mean(y, axis=-1, keepdims=True)
    var = jnp.mean((y - mean) ** 2, axis=-1, keepdims=True)
    y = (y - mean) / jnp.sqrt(var + LN_EPS)
    return y * gamma.astype(jnp.float32) + beta.astype(jnp.float32)


if __name__ == "__main__":
    # Small deterministic shapes consistent with the module:
    #   hidden_size = 32, intermediate_size = 64, input last dim = 2*hidden = 64
    batch, seq = 2, 8
    hidden, inter = 32, 64

    key = jax.random.PRNGKey(0)
    k_x, k_w1, k_w2, k_g, k_b = jax.random.split(key, 5)

    hs_f32 = jax.random.normal(k_x, (batch, seq, 2 * hidden), jnp.float32)
    # torch nn.Linear weight shapes: fc1.weight (inter, 2*hidden), fc2.weight (hidden, inter)
    w1_f32 = jax.random.normal(k_w1, (inter, 2 * hidden), jnp.float32) * 0.1
    w2_f32 = jax.random.normal(k_w2, (hidden, inter), jnp.float32) * 0.1
    gamma = jnp.ones((hidden,), jnp.float32) + 0.01 * jax.random.normal(k_g, (hidden,))
    beta = 0.01 * jax.random.normal(k_b, (hidden,))

    # --- f32 path (tight numerical check) ---
    out_f32 = efficientloftr_mlp(hs_f32, w1_f32, w2_f32, gamma, beta)
    out_f32 = jax.block_until_ready(out_f32)
    ref_f32 = _reference(hs_f32, w1_f32, w2_f32, gamma, beta)
    assert out_f32.shape == (batch, seq, hidden), out_f32.shape
    assert out_f32.dtype == jnp.float32, out_f32.dtype
    assert jnp.allclose(out_f32, ref_f32, atol=1e-4, rtol=1e-4), float(
        jnp.max(jnp.abs(out_f32 - ref_f32))
    )

    # --- bf16 path (fast MXU path; looser tolerance vs f32 reference) ---
    hs_bf16 = hs_f32.astype(jnp.bfloat16)
    w1_bf16 = w1_f32.astype(jnp.bfloat16)
    w2_bf16 = w2_f32.astype(jnp.bfloat16)
    out_bf16 = efficientloftr_mlp(hs_bf16, w1_bf16, w2_bf16, gamma, beta)
    out_bf16 = jax.block_until_ready(out_bf16)
    ref_bf16 = _reference(hs_bf16, w1_bf16, w2_bf16, gamma, beta)
    assert out_bf16.shape == (batch, seq, hidden), out_bf16.shape
    assert out_bf16.dtype == jnp.bfloat16, out_bf16.dtype
    assert jnp.allclose(out_bf16.astype(jnp.float32), ref_bf16,
                        atol=5e-2, rtol=5e-2), float(
        jnp.max(jnp.abs(out_bf16.astype(jnp.float32) - ref_bf16))
    )

    print("KERNEL_OK")
</pallas_src>

<mosaic_0001>
module attributes {stable_mosaic.version = 11 : i64} {
  func.func @_mlp_kernel(%arg0: i32, %arg1: memref<16x64xf32, #tpu.memory_space<vmem>>, %arg2: memref<64x64xf32, #tpu.memory_space<vmem>>, %arg3: memref<64x32xf32, #tpu.memory_space<vmem>>, %arg4: memref<1x32xf32, #tpu.memory_space<vmem>>, %arg5: memref<1x32xf32, #tpu.memory_space<vmem>>, %arg6: memref<16x32xf32, #tpu.memory_space<vmem>>) attributes {dimension_semantics = [#tpu.dimension_semantics<parallel>], iteration_bounds = array<i64: 1>, scalar_prefetch = 0 : i64, scratch_operands = 0 : i64, tpu.core_type = #tpu.core_type<tc>, window_params = [{transform_indices = @transform_0, window_bounds = array<i64: 16, 64>}, {pipeline_mode = #tpu.pipeline_mode<synchronous>, transform_indices = @transform_1, window_bounds = array<i64: 64, 64>}, {pipeline_mode = #tpu.pipeline_mode<synchronous>, transform_indices = @transform_2, window_bounds = array<i64: 64, 32>}, {pipeline_mode = #tpu.pipeline_mode<synchronous>, transform_indices = @transform_3, window_bounds = array<i64: 1, 32>}, {pipeline_mode = #tpu.pipeline_mode<synchronous>, transform_indices = @transform_4, window_bounds = array<i64: 1, 32>}, {transform_indices = @transform_5, window_bounds = array<i64: 16, 32>}]} {
    %c0 = arith.constant 0 : index
    %c0_0 = arith.constant 0 : index
    %0 = vector.load %arg1[%c0, %c0_0] : memref<16x64xf32, #tpu.memory_space<vmem>>, vector<16x64xf32>
    %c0_1 = arith.constant 0 : index
    %c0_2 = arith.constant 0 : index
    %1 = vector.load %arg2[%c0_1, %c0_2] : memref<64x64xf32, #tpu.memory_space<vmem>>, vector<64x64xf32>
    %cst = arith.constant dense<0.000000e+00> : vector<16x64xf32>
    %2 = tpu.matmul %0, %1, %cst {dimension_numbers = #tpu.dot_dimension_numbers<[1], [0], [0], [1], [0, 0, 1, 1], [], []>} : vector<16x64xf32>, vector<64x64xf32>, vector<16x64xf32> -> vector<16x64xf32>
    %cst_3 = arith.constant 0.000000e+00 : f32
    %3 = vector.broadcast %cst_3 : f32 to vector<16x64xf32>
    %4 = arith.cmpf oge, %2, %3 : vector<16x64xf32>
    %cst_4 = arith.constant 0.00999999977 : f32
    %5 = vector.broadcast %cst_4 : f32 to vector<16x64xf32>
    %6 = arith.mulf %5, %2 : vector<16x64xf32>
    %7 = arith.select %4, %2, %6 : vector<16x64xi1>, vector<16x64xf32>
    %c0_5 = arith.constant 0 : index
    %c0_6 = arith.constant 0 : index
    %8 = vector.load %arg3[%c0_5, %c0_6] : memref<64x32xf32, #tpu.memory_space<vmem>>, vector<64x32xf32>
    %cst_7 = arith.constant dense<0.000000e+00> : vector<16x32xf32>
    %9 = tpu.matmul %7, %8, %cst_7 {dimension_numbers = #tpu.dot_dimension_numbers<[1], [0], [0], [1], [0, 0, 1, 1], [], []>} : vector<16x64xf32>, vector<64x32xf32>, vector<16x32xf32> -> vector<16x32xf32>
    %cst_8 = arith.constant dense<0.000000e+00> : vector<16xf32>
    %10 = vector.multi_reduction <add>, %9, %cst_8 [1] : vector<16x32xf32> to vector<16xf32>
    %11 = vector.shape_cast %10 : vector<16xf32> to vector<16x1xf32>
    %cst_9 = arith.constant 3.200000e+01 : f32
    %12 = vector.broadcast %cst_9 : f32 to vector<16x1xf32>
    %13 = arith.divf %11, %12 : vector<16x1xf32>
    %14 = vector.broadcast %13 : vector<16x1xf32> to vector<16x32xf32>
    %15 = arith.subf %9, %14 : vector<16x32xf32>
    %16 = arith.mulf %15, %15 : vector<16x32xf32>
    %cst_10 = arith.constant dense<0.000000e+00> : vector<16xf32>
    %17 = vector.multi_reduction <add>, %16, %cst_10 [1] : vector<16x32xf32> to vector<16xf32>
    %18 = vector.shape_cast %17 : vector<16xf32> to vector<16x1xf32>
    %cst_11 = arith.constant 3.200000e+01 : f32
    %19 = vector.broadcast %cst_11 : f32 to vector<16x1xf32>
    %20 = arith.divf %18, %19 : vector<16x1xf32>
    %cst_12 = arith.constant 9.99999974E-6 : f32
    %21 = vector.broadcast %cst_12 : f32 to vector<16x1xf32>
    %22 = arith.addf %20, %21 : vector<16x1xf32>
    %23 = math.rsqrt %22 : vector<16x1xf32>
    %24 = vector.broadcast %23 : vector<16x1xf32> to vector<16x32xf32>
    %25 = arith.mulf %15, %24 : vector<16x32xf32>
    %c0_13 = arith.constant 0 : index
    %c0_14 = arith.constant 0 : index
    %26 = vector.load %arg4[%c0_13, %c0_14] : memref<1x32xf32, #tpu.memory_space<vmem>>, vector<1x32xf32>
    %27 = vector.broadcast %26 : vector<1x32xf32> to vector<16x32xf32>
    %28 = arith.mulf %25, %27 : vector<16x32xf32>
    %c0_15 = arith.constant 0 : index
    %c0_16 = arith.constant 0 : index
    %29 = vector.load %arg5[%c0_15, %c0_16] : memref<1x32xf32, #tpu.memory_space<vmem>>, vector<1x32xf32>
    %30 = vector.broadcast %29 : vector<1x32xf32> to vector<16x32xf32>
    %31 = arith.addf %28, %30 : vector<16x32xf32>
    %c0_17 = arith.constant 0 : index
    %c0_18 = arith.constant 0 : index
    %32 = vector.load %arg6[%c0_17, %c0_18] : memref<16x32xf32, #tpu.memory_space<vmem>>, vector<16x32xf32>
    tpu.vector_store %arg6[%c0_17, %c0_18], %31 {strides = array<i32>} : memref<16x32xf32, #tpu.memory_space<vmem>>, vector<16x32xf32>,
    return
  }
  func.func @transform_0(%arg0: i32) -> (i32, i32) {
    %c0_i32 = arith.constant 0 : i32
    %c0_i32_0 = arith.constant 0 : i32
    return %arg0, %c0_i32 : i32, i32
  }
  func.func @transform_1(%arg0: i32) -> (i32, i32) {
    %c0_i32 = arith.constant 0 : i32
    %c0_i32_0 = arith.constant 0 : i32
    %c0_i32_1 = arith.constant 0 : i32
    return %c0_i32, %c0_i32_0 : i32, i32
  }
  func.func @transform_2(%arg0: i32) -> (i32, i32) {
    %c0_i32 = arith.constant 0 : i32
    %c0_i32_0 = arith.constant 0 : i32
    %c0_i32_1 = arith.constant 0 : i32
    return %c0_i32, %c0_i32_0 : i32, i32
  }
  func.func @transform_3(%arg0: i32) -> (i32, i32) {
    %c0_i32 = arith.constant 0 : i32
    %c0_i32_0 = arith.constant 0 : i32
    %c0_i32_1 = arith.constant 0 : i32
    return %c0_i32, %c0_i32_0 : i32, i32
  }
  func.func @transform_4(%arg0: i32) -> (i32, i32) {
    %c0_i32 = arith.constant 0 : i32
    %c0_i32_0 = arith.constant 0 : i32
    %c0_i32_1 = arith.constant 0 : i32
    return %c0_i32, %c0_i32_0 : i32, i32
  }
  func.func @transform_5(%arg0: i32) -> (i32, i32) {
    %c0_i32 = arith.constant 0 : i32
    %c0_i32_0 = arith.constant 0 : i32
    return %arg0, %c0_i32 : i32, i32
  }
}

</mosaic_0001>

<llo_original>
// kernel: tpu_custom_call.1
$region0: #{tpu_custom_call.1}
  #allocation0 [shape = 'u32[]', space=smem, size = 0x4, offset = 0x4, fixed_abs, tag = 'smem constant byte address 0x4 - core index']
  #allocation1 [shape = 'u32[144,128]{1,0:T(1,128)}', space=vmem, size = 0x12000, scoped, tag = 'internal scratch']
  %s0 = inlined_call_operand.vmem [shape: f32[16,64], index: 0, kind: input, shape index: {}]
  %s1 = inlined_call_operand.vmem [shape: f32[64,64], index: 1, kind: input, shape index: {}]
  %s2 = inlined_call_operand.vmem [shape: f32[64,32], index: 2, kind: input, shape index: {}]
  %s3 = inlined_call_operand.vmem [shape: f32[1,32], index: 3, kind: input, shape index: {}]
  %s4 = inlined_call_operand.vmem [shape: f32[1,32], index: 4, kind: input, shape index: {}]
  %s5 = inlined_call_operand.hbm [shape: f32[16,32], index: 5, kind: output, shape index: {}]
  %s6 = sld [smem:[#allocation0]]
  $region30: #{tpu_custom_call.1} parent=0
    _
  %s8 = ssub.s32 1, %s6
  %s9 = scalar_select 0, %s8, %s6
  $region1: #{tpu_custom_call.1} parent=0
    #allocation2 [shape = 'u8[8192]{0}', space=vmem, size = 0x2000, scoped, tag = 'output window, operand 0, single buffered']
    #allocation3 [shape = 's32[1]{0}', space=sflag, size = 0x4, scoped, tag = 'scoped memory for tpu_custom_call.1']
    %10 = vsyncpa [#allocation3], 0
    // Predicated region
    $region2: #{tpu_custom_call.1} parent=1 // pred_check
      _
    $region3: #{tpu_custom_call.1} parent=1 // pred_check_branch
      %12 = sbr.rel (0) target = $region5
    $region4: #{tpu_custom_call.1} parent=1 // pred_region
      _
    $region5: #{tpu_custom_call.1} parent=1 // pred_fallthru
      _
    // Predicated region
    $region6: #{tpu_custom_call.1} parent=1 // pred_check
      _
    $region7: #{tpu_custom_call.1} parent=1 // pred_check_branch
      %14 = sbr.rel (0) target = $region9
    $region8: #{tpu_custom_call.1} parent=1 // pred_region
      _
    $region9: #{tpu_custom_call.1} parent=1 // pred_fallthru
      _
    // Predicated region
    $region10: #{tpu_custom_call.1} parent=1 // pred_check
      _
    $region11: #{tpu_custom_call.1} parent=1 // pred_check_branch
      %16 = sbr.rel (0) target = $region13
    $region12: #{tpu_custom_call.1} parent=1 // pred_region
      _
    $region13: #{tpu_custom_call.1} parent=1 // pred_fallthru
      _
    // Predicated region
    $region14: #{tpu_custom_call.1} parent=1 // pred_check
      _
    $region15: #{tpu_custom_call.1} parent=1 // pred_check_branch
      %18 = sbr.rel (0) target = $region17
    $region16: #{tpu_custom_call.1} parent=1 // pred_region
      _
    $region17: #{tpu_custom_call.1} parent=1 // pred_fallthru
      _
    // Predicated region
    $region18: #{tpu_custom_call.1} parent=1 // pred_check
      _
    $region19: #{tpu_custom_call.1} parent=1 // pred_check_branch
      %20 = sbr.rel (0) target = $region21
    $region20: #{tpu_custom_call.1} parent=1 // pred_region
      _
    $region21: #{tpu_custom_call.1} parent=1 // pred_fallthru
      _
    %v21 = vld [vmem:[%s0] sm:$0xff]
    %v22 = vld [vmem:[%s0 + $0x8] sm:$0xff]
    %v23 = vld [vmem:[%s1] sm:$0xff]
    %v24 = vld [vmem:[%s1 + $0x8] sm:$0xff]
    %v25 = vld [vmem:[%s1 + $0x10] sm:$0xff]
    %v26 = vld [vmem:[%s1 + $0x18] sm:$0xff]
    %v27 = vld [vmem:[%s1 + $0x20] sm:$0xff]
    %v28 = vld [vmem:[%s1 + $0x28] sm:$0xff]
    %v29 = vld [vmem:[%s1 + $0x30] sm:$0xff]
    %v30 = vld [vmem:[%s1 + $0x38] sm:$0xff]
    %vm31 = vcmask 523264
    %v33 = vsel %vm31, %v21, 0
    %v36 = vsel %vm31, %v22, 0
    %38 = vmatprep.subr.mxu0 0.0
    %39 = vmatpush1.msra.mxu0 %v23
    %40 = vmatprep.subr.mxu0 0.0
    %41 = vmatpush1.msra.mxu0 %v24
    %42 = vmatprep.subr.mxu0 0.0
    %43 = vmatpush1.msra.mxu0 %v25
    %44 = vmatprep.subr.mxu0 0.0
    %45 = vmatpush1.msra.mxu0 %v26
    %46 = vmatprep.subr.mxu0 0.0
    %47 = vmatpush1.msra.mxu0 %v27
    %48 = vmatprep.subr.mxu0 0.0
    %49 = vmatpush1.msra.mxu0 %v28
    %50 = vmatprep.subr.mxu0 0.0
    %51 = vmatpush1.msra.mxu0 %v29
    %52 = vmatprep.subr.mxu0 0.0
    %53 = vmatpush1.msra.mxu0 %v30
    %54 = vmatprep.subr.mxu0 0.0
    %55 = vmatpush1.msra.mxu0 0.0
    %56 = vmatprep.subr.mxu0 0.0
    %57 = vmatpush1.msra.mxu0 0.0
    %58 = vmatprep.subr.mxu0 0.0
    %59 = vmatpush1.msra.mxu0 0.0
    %60 = vmatprep.subr.mxu0 0.0
    %61 = vmatpush1.msra.mxu0 0.0
    %62 = vmatprep.subr.mxu0 0.0
    %63 = vmatpush1.msra.mxu0 0.0
    %64 = vmatprep.subr.mxu0 0.0
    %65 = vmatpush1.msra.mxu0 0.0
    %66 = vmatprep.subr.mxu0 0.0
    %67 = vmatpush1.msra.mxu0 0.0
    %68 = vmatprep.subr.mxu0 0.0
    %69 = vmatpush1.msra.mxu0 0.0
    %70 = vmatprep.subr.mxu0 0.0
    %71 = vmatpush1.msra.mxu0 0.0
    %72 = vmatprep.subr.mxu0 0.0
    %73 = vmatpush1.msra.mxu0 0.0
    %74 = vmatprep.subr.mxu0 0.0
    %75 = vmatpush1.msra.mxu0 0.0
    %76 = vmatprep.subr.mxu0 0.0
    %77 = vmatpush1.msra.mxu0 0.0
    %78 = vmatprep.subr.mxu0 0.0
    %79 = vmatpush1.msra.mxu0 0.0
    %80 = vmatprep.subr.mxu0 0.0
    %81 = vmatpush1.msra.mxu0 0.0
    %82 = vmatprep.subr.mxu0 0.0
    %83 = vmatpush1.msra.mxu0 0.0
    %84 = vmatprep.subr.mxu0 0.0
    %85 = vmatpush1.msra.mxu0 0.0
    %86 = vmatprep.subr.mxu0 0.0
    %87 = vmatpush1.msra.mxu0 0.0
    %88 = vmatprep.subr.mxu0 0.0
    %89 = vmatpush1.msra.mxu0 0.0
    %90 = vmatprep.subr.mxu0 0.0
    %91 = vmatpush1.msra.mxu0 0.0
    %92 = vmatprep.subr.mxu0 0.0
    %93 = vmatpush1.msra.mxu0 0.0
    %94 = vmatprep.subr.mxu0 0.0
    %95 = vmatpush1.msra.mxu0 0.0
    %96 = vmatprep.subr.mxu0 0.0
    %97 = vmatpush1.msra.mxu0 0.0
    %98 = vmatprep.subr.mxu0 0.0
    %99 = vmatpush1.msra.mxu0 0.0
    %100 = vmatprep.subr.mxu0 0.0
    %101 = vmatpush1.msra.mxu0 0.0
    %102 = vmatprep.mubr.f32.mxu0 0.0
    %103 = vmatmul.mubr.f32.gmra.mrb[0].mxu0 %v33
    %v104 = vpop.f32.mrb[0].mxu0
    %v105 = vadd.f32 0.0, %v104
    %v106 = vpop.f32.mrb[0].mxu0
    %107 = vmatprep.mubr.f32.mxu0 0.0
    %108 = vmatmul.mubr.f32.gmra.mrb[0].mxu0 %v36
    %v109 = vpop.f32.mrb[0].mxu0
    %v110 = vadd.f32 0.0, %v109
    %v111 = vpop.f32.mrb[0].mxu0
    %112 = vdwg.mxu0
    %vm113 = vcmp.ge.f32.partialorder %v105, 0.0
    %vm114 = vcmp.ge.f32.partialorder %v110, 0.0
    %v115 = vmul.f32 %v105, 0.01
    %v116 = vmul.f32 %v110, 0.01
    %v117 = vsel %vm113, %v105, %v115
    %v118 = vsel %vm114, %v110, %v116
    %v119 = vld [vmem:[%s2] sm:$0xff]
    %v120 = vld [vmem:[%s2 + $0x8] sm:$0xff]
    %v121 = vld [vmem:[%s2 + $0x10] sm:$0xff]
    %v122 = vld [vmem:[%s2 + $0x18] sm:$0xff]
    %v123 = vld [vmem:[%s2 + $0x20] sm:$0xff]
    %v124 = vld [vmem:[%s2 + $0x28] sm:$0xff]
    %v125 = vld [vmem:[%s2 + $0x30] sm:$0xff]
    %v126 = vld [vmem:[%s2 + $0x38] sm:$0xff]
    %v128 = vsel %vm31, %v117, 0
    %v131 = vsel %vm31, %v118, 0
    %133 = vmatprep.subr.mxu0 0.0
    %134 = vmatpush1.msra.mxu0 %v119
    %135 = vmatprep.subr.mxu0 0.0
    %136 = vmatpush1.msra.mxu0 %v120
    %137 = vmatprep.subr.mxu0 0.0
    %138 = vmatpush1.msra.mxu0 %v121
    %139 = vmatprep.subr.mxu0 0.0
    %140 = vmatpush1.msra.mxu0 %v122
    %141 = vmatprep.subr.mxu0 0.0
    %142 = vmatpush1.msra.mxu0 %v123
    %143 = vmatprep.subr.mxu0 0.0
    %144 = vmatpush1.msra.mxu0 %v124
    %145 = vmatprep.subr.mxu0 0.0
    %146 = vmatpush1.msra.mxu0 %v125
    %147 = vmatprep.subr.mxu0 0.0
    %148 = vmatpush1.msra.mxu0 %v126
    %149 = vmatprep.subr.mxu0 0.0
    %150 = vmatpush1.msra.mxu0 0.0
    %151 = vmatprep.subr.mxu0 0.0
    %152 = vmatpush1.msra.mxu0 0.0
    %153 = vmatprep.subr.mxu0 0.0
    %154 = vmatpush1.msra.mxu0 0.0
    %155 = vmatprep.subr.mxu0 0.0
    %156 = vmatpush1.msra.mxu0 0.0
    %157 = vmatprep.subr.mxu0 0.0
    %158 = vmatpush1.msra.mxu0 0.0
    %159 = vmatprep.subr.mxu0 0.0
    %160 = vmatpush1.msra.mxu0 0.0
    %161 = vmatprep.subr.mxu0 0.0
    %162 = vmatpush1.msra.mxu0 0.0
    %163 = vmatprep.subr.mxu0 0.0
    %164 = vmatpush1.msra.mxu0 0.0
    %165 = vmatprep.subr.mxu0 0.0
    %166 = vmatpush1.msra.mxu0 0.0
    %167 = vmatprep.subr.mxu0 0.0
    %168 = vmatpush1.msra.mxu0 0.0
    %169 = vmatprep.subr.mxu0 0.0
    %170 = vmatpush1.msra.mxu0 0.0
    %171 = vmatprep.subr.mxu0 0.0
    %172 = vmatpush1.msra.mxu0 0.0
    %173 = vmatprep.subr.mxu0 0.0
    %174 = vmatpush1.msra.mxu0 0.0
    %175 = vmatprep.subr.mxu0 0.0
    %176 = vmatpush1.msra.mxu0 0.0
    %177 = vmatprep.subr.mxu0 0.0
    %178 = vmatpush1.msra.mxu0 0.0
    %179 = vmatprep.subr.mxu0 0.0
    %180 = vmatpush1.msra.mxu0 0.0
    %181 = vmatprep.subr.mxu0 0.0
    %182 = vmatpush1.msra.mxu0 0.0
    %183 = vmatprep.subr.mxu0 0.0
    %184 = vmatpush1.msra.mxu0 0.0
    %185 = vmatprep.subr.mxu0 0.0
    %186 = vmatpush1.msra.mxu0 0.0
    %187 = vmatprep.subr.mxu0 0.0
    %188 = vmatpush1.msra.mxu0 0.0
    %189 = vmatprep.subr.mxu0 0.0
    %190 = vmatpush1.msra.mxu0 0.0
    %191 = vmatprep.subr.mxu0 0.0
    %192 = vmatpush1.msra.mxu0 0.0
    %193 = vmatprep.subr.mxu0 0.0
    %194 = vmatpush1.msra.mxu0 0.0
    %195 = vmatprep.subr.mxu0 0.0
    %196 = vmatpush1.msra.mxu0 0.0
    %197 = vmatprep.mubr.f32.mxu0 0.0
    %198 = vmatmul.mubr.f32.gmra.mrb[0].mxu0 %v128
    %v199 = vpop.f32.mrb[0].mxu0
    %v200 = vadd.f32 0.0, %v199
    %v201 = vpop.f32.mrb[0].mxu0
    %202 = vmatprep.mubr.f32.mxu0 0.0
    %203 = vmatmul.mubr.f32.gmra.mrb[0].mxu0 %v131
    %v204 = vpop.f32.mrb[0].mxu0
    %v205 = vadd.f32 0.0, %v204
    %v206 = vpop.f32.mrb[0].mxu0
    %207 = vdwg.mxu0
    %vm208 = vcmask 261120
    %v209 = vsel %vm208, %v200, 0.0
    %210 = vadd.xlane.f32.xlu0 %v209
    %v211 = vpop.xlane.xlu0 %210
    %v212 = vsel %vm208, %v205, 0.0
    %213 = vadd.xlane.f32.xlu0 %v212
    %v214 = vpop.xlane.xlu0 %213
    %v215 = vrcp.pop 32.0
    %v216 = vmul.f32 %v211, %v215
    %v217 = vmul.f32 %v214, %v215
    %v218 = vsub.f32 %v200, %v216
    %v219 = vsub.f32 %v205, %v217
    %v220 = vmul.f32 %v218, %v218
    %v221 = vmul.f32 %v219, %v219
    %v222 = vsel %vm208, %v220, 0.0
    %223 = vadd.xlane.f32.xlu0 %v222
    %v224 = vpop.xlane.xlu0 %223
    %v225 = vsel %vm208, %v221, 0.0
    %226 = vadd.xlane.f32.xlu0 %v225
    %v227 = vpop.xlane.xlu0 %226
    %v228 = vmul.f32 %v224, %v215
    %v229 = vmul.f32 %v227, %v215
    %v230 = vadd.f32 %v228, 1e-05
    %v231 = vadd.f32 %v229, 1e-05
    %v232 = vrsqrt.pop %v230
    %v233 = vrsqrt.pop %v231
    %v234 = vmul.f32 %v218, %v232
    %v235 = vmul.f32 %v219, %v233
    %v236 = vld [vmem:[%s3] sm:$0x1]
    %v238 = vlaneseq
    %v239 = vshrl.u32 %v238, 7
    %v240 = vsub.s32 0, %v239
    %v241 = vrot.slane %v236, %v240
    %v243 = vmul.f32 %v234, %v241
    %v244 = vmul.f32 %v235, %v241
    %v245 = vld [vmem:[%s4] sm:$0x1]
    %v247 = vlaneseq
    %v248 = vshrl.u32 %v247, 7
    %v249 = vsub.s32 0, %v248
    %v250 = vrot.slane %v245, %v249
    %v252 = vadd.f32 %v243, %v250
    %v253 = vadd.f32 %v244, %v250
    %254 = vst.msk [vmem:[#allocation2] sm:$0xff] %vm208, %v252
    %255 = vst.msk [vmem:[#allocation2 + $0x8] sm:$0xff] %vm208, %v253
    // Predicated region
    $region22: #{tpu_custom_call.1} parent=1 // pred_check
      _
    $region23: #{tpu_custom_call.1} parent=1 // pred_check_branch
      %257 = sbr.rel (0) target = $region25
    $region24: #{tpu_custom_call.1} parent=1 // pred_region
      %s259 = ssub.s32 256, 256
      %260 = vsyncadd [#allocation3], %s259
      %s261 = sshll.u32 [#allocation2], 4
      %s262 = int_to_ptr.vmem [resolvable:$true] %s261
      %267 = dma.vmem_to_hbm [thread:$0]  %s262, 256, %s5, [#allocation3], 128, 128, 8
    $region25: #{tpu_custom_call.1} parent=1 // pred_fallthru
      _
    // Predicated region
    $region26: #{tpu_custom_call.1} parent=1 // pred_check
      _
    $region27: #{tpu_custom_call.1} parent=1 // pred_check_branch
      %269 = sbr.rel (0) target = $region29
    $region28: #{tpu_custom_call.1} parent=1 // pred_region
      %270 = dma.done [#allocation3], 256
    $region29: #{tpu_custom_call.1} parent=1 // pred_fallthru
      _
    %271 = vsyncpa [#allocation3], 1

</llo_original>
